<compile_context>
chip_gen: v5e
topology: v5e:2x2
jax: 0.10.0
libtpu: 0.0.40
codegen_flags: <defaults>
</compile_context>

<pallas_src>
import jax
import jax.numpy as jnp
from jax import lax
from jax.experimental import pallas as pl
from jax.experimental.pallas import tpu as pltpu

LARGE_NUM = 1000000000.0
_NORM_EPS = 1e-12  # F.normalize default eps


def _round_up(x, m):
    return -(-x // m) * m


def _vmem_capacity_bytes():
    try:
        return int(pltpu.get_tpu_info().vmem_capacity_bytes)
    except Exception:
        return 64 * 1024 * 1024  # conservative default (v7x per-core VMEM)


def _pick_block(batch, dim, vmem_cap):
    """Multiple-of-128 tiles for real batches; round tiny batches up to x8."""
    if batch >= 256:
        blk = 256
    elif batch >= 128:
        blk = 128
    else:
        blk = max(8, _round_up(batch, 8))
    # Shrink if double-buffered bf16 streaming tiles (2 operands) would blow VMEM.
    while blk > 128 and 4 * blk * dim * 2 > int(0.4 * vmem_cap):
        blk //= 2
    return blk


def _make_resident_kernel(batch, b_pad, blk, n_rows):
    """Keys-resident path: 1-D grid over query tiles, E fully resident in VMEM."""

    def kernel(inv_t_ref, e_ref, loss_ref):
        qi = pl.program_id(0)
        inv_t = inv_t_ref[0, 0]
        q0 = pl.multiple_of(qi * blk, blk)

        q = e_ref[pl.ds(q0, blk), :]          # (blk, D) bf16 query tile (from resident E)
        k = e_ref[...]                        # (n_rows, D) bf16 resident keys
        s = lax.dot_general(q, k, (((1,), (1,)), ((), ())),
                            preferred_element_type=jnp.float32) * inv_t  # (blk, n_rows) f32

        r = q0 + lax.broadcasted_iota(jnp.int32, (blk, n_rows), 0)   # global query row
        c = lax.broadcasted_iota(jnp.int32, (blk, n_rows), 1)        # global key row
        c_view = jnp.where(c < b_pad, c, c - b_pad)                  # key index within its view
        neg = (r == c) | (c_view >= batch)                           # self-sim + padded keys
        s_m = jnp.where(neg, s - LARGE_NUM, s)

        m = jnp.max(s_m, axis=-1, keepdims=True)
        lse = m + jnp.log(jnp.sum(jnp.exp(s_m - m), axis=-1, keepdims=True))

        partner = jnp.where(r < b_pad, r + b_pad, r - b_pad)
        pos = jnp.sum(jnp.where(c == partner, s, 0.0), axis=-1, keepdims=True)

        r1 = q0 + lax.broadcasted_iota(jnp.int32, (blk, 1), 0)
        r1_view = jnp.where(r1 < b_pad, r1, r1 - b_pad)
        loss_ref[...] = jnp.where(r1_view < batch, lse - pos, 0.0)   # zero padded rows

    return kernel


def _make_stream_kernel(batch, b_pad, blk, num_tiles):
    """Streaming path: flash-style 2-D grid with online logsumexp over key tiles."""
    half = num_tiles // 2

    def kernel(inv_t_ref, q_ref, k_ref, loss_ref, m_ref, l_ref, pos_ref):
        qi = pl.program_id(0)   # query tile (parallel)
        ki = pl.program_id(1)   # key tile   (reduction)
        inv_t = inv_t_ref[0, 0]

        @pl.when(ki == 0)
        def _():
            m_ref[...] = jnp.full_like(m_ref, -jnp.inf)
            l_ref[...] = jnp.zeros_like(l_ref)
            pos_ref[...] = jnp.zeros_like(pos_ref)

        s = lax.dot_general(q_ref[...], k_ref[...], (((1,), (1,)), ((), ())),
                            preferred_element_type=jnp.float32) * inv_t   # (blk, blk) f32

        r = qi * blk + lax.broadcasted_iota(jnp.int32, (blk, blk), 0)
        c = ki * blk + lax.broadcasted_iota(jnp.int32, (blk, blk), 1)
        c_view = jnp.where(c < b_pad, c, c - b_pad)
        neg = (r == c) | (c_view >= batch)                 # self-sim + padded keys
        s_m = jnp.where(neg, s - LARGE_NUM, s)

        # Single merged online-logsumexp update (mask applied as data, no branch dup).
        m_prev = m_ref[...]
        m_new = jnp.maximum(m_prev, jnp.max(s_m, axis=-1, keepdims=True))
        alpha = jnp.exp(m_prev - m_new)
        l_ref[...] = alpha * l_ref[...] + jnp.sum(jnp.exp(s_m - m_new),
                                                  axis=-1, keepdims=True)
        m_ref[...] = m_new

        # Positive logit lives in exactly one key tile per query tile.
        partner_ki = jnp.where(qi < half, qi + half, qi - half)

        @pl.when(ki == partner_ki)
        def _():
            partner = jnp.where(r < b_pad, r + b_pad, r - b_pad)
            pos_ref[...] = jnp.sum(jnp.where(c == partner, s, 0.0),
                                   axis=-1, keepdims=True)

        @pl.when(ki == num_tiles - 1)
        def _():
            r1 = qi * blk + lax.broadcasted_iota(jnp.int32, (blk, 1), 0)
            r1_view = jnp.where(r1 < b_pad, r1, r1 - b_pad)
            loss = m_ref[...] + jnp.log(l_ref[...]) - pos_ref[...]
            loss_ref[...] = jnp.where(r1_view < batch, loss, 0.0)   # zero padded rows

    return kernel


def ntxent_loss(embedding1, embedding2, temperature=1.0, *, block=None, resident=None):
    """NTXent / SimCLR loss forward pass (matches the PyTorch module)."""
    batch, dim = embedding1.shape
    assert embedding2.shape == (batch, dim)

    vmem_cap = _vmem_capacity_bytes()
    blk = (_pick_block(batch, dim, vmem_cap) if block is None
           else max(8, _round_up(int(block), 8)))
    b_pad = _round_up(batch, blk)          # pad each view to a whole tile
    n_rows = 2 * b_pad                     # stacked rows
    num_tiles = n_rows // blk              # always even, >= 2 (megacore-friendly)

    # Hoisted prep (once): f32 L2-normalize, zero-pad, stack views, cast to bf16.
    def _prep(x):
        x = x.astype(jnp.float32)
        nrm = jnp.sqrt(jnp.sum(x * x, axis=-1, keepdims=True))
        x = x / jnp.maximum(nrm, _NORM_EPS)
        if b_pad != batch:
            x = jnp.pad(x, ((0, b_pad - batch), (0, 0)))
        return x

    e = jnp.concatenate([_prep(embedding1), _prep(embedding2)], axis=0).astype(jnp.bfloat16)
    inv_t = (1.0 / jnp.asarray(temperature, jnp.float32)).reshape(1, 1)

    vmem_limit = max(32 * 1024 * 1024, int(0.85 * vmem_cap))
    keys_bytes = n_rows * dim * 2                       # resident bf16 E
    slab_bytes = blk * n_rows * 4                       # (blk, 2B) f32 similarity slab
    resident_need = 2 * keys_bytes + 4 * slab_bytes + (2 << 20)
    if resident is None:
        resident = resident_need <= int(0.7 * vmem_cap)

    if resident:
        kernel = _make_resident_kernel(batch, b_pad, blk, n_rows)
        cost = pl.CostEstimate(
            flops=2 * n_rows * n_rows * dim,
            transcendentals=n_rows * n_rows,
            bytes_accessed=keys_bytes + n_rows * 4 + 8)
        per_row = pl.pallas_call(
            kernel,
            out_shape=jax.ShapeDtypeStruct((n_rows, 1), jnp.float32),
            grid_spec=pltpu.PrefetchScalarGridSpec(
                num_scalar_prefetch=0,
                grid=(num_tiles,),
                in_specs=[
                    pl.BlockSpec(memory_space=pltpu.SMEM),            # 1/temperature (1,1)
                    pl.BlockSpec((n_rows, dim), lambda qi: (0, 0)),   # resident stacked E
                ],
                out_specs=pl.BlockSpec((blk, 1), lambda qi: (qi, 0)),
            ),
            compiler_params=pltpu.CompilerParams(
                dimension_semantics=("parallel",),
                vmem_limit_bytes=vmem_limit,
            ),
            cost_estimate=cost,
        )(inv_t, e)
    else:
        # Streaming fallback for problems whose keys do not fit VMEM.
        # (Optional per-chip tweak: pipeline_mode=pl.Buffered(3) on the key stream if
        #  DMA is exposed on v5e; omitted here to keep the spec minimal.)
        kernel = _make_stream_kernel(batch, b_pad, blk, num_tiles)
        cost = pl.CostEstimate(
            flops=2 * n_rows * n_rows * dim,
            transcendentals=n_rows * n_rows,
            bytes_accessed=(num_tiles + 1) * n_rows * dim * 2 + n_rows * 4 + 8)
        per_row = pl.pallas_call(
            kernel,
            out_shape=jax.ShapeDtypeStruct((n_rows, 1), jnp.float32),
            grid_spec=pltpu.PrefetchScalarGridSpec(
                num_scalar_prefetch=0,
                grid=(num_tiles, num_tiles),
                in_specs=[
                    pl.BlockSpec(memory_space=pltpu.SMEM),                # 1/temperature
                    pl.BlockSpec((blk, dim), lambda qi, ki: (qi, 0)),     # query tile of E
                    pl.BlockSpec((blk, dim), lambda qi, ki: (ki, 0)),     # key tile of E
                ],
                out_specs=pl.BlockSpec((blk, 1), lambda qi, ki: (qi, 0)),
                scratch_shapes=[pltpu.VMEM((blk, 1), jnp.float32)] * 3,   # m, l, pos
            ),
            compiler_params=pltpu.CompilerParams(
                dimension_semantics=("parallel", "arbitrary"),
                vmem_limit_bytes=vmem_limit,
            ),
            cost_estimate=cost,
        )(inv_t, e, e)

    # Final O(2B) reduction: mean_i(loss_a + loss_b) == sum(per_row) / B
    # (padded rows were zeroed in-kernel).
    return jnp.sum(per_row) / batch


def ntxent_ref(e1, e2, temperature=1.0):
    """Pure-JAX reference mirroring the PyTorch forward."""
    e1 = e1.astype(jnp.float32)
    e2 = e2.astype(jnp.float32)
    B = e1.shape[0]
    norm = lambda x: x / jnp.maximum(
        jnp.sqrt(jnp.sum(x * x, -1, keepdims=True)), _NORM_EPS)
    e1, e2 = norm(e1), norm(e2)
    eye = jnp.eye(B, dtype=jnp.float32)
    aa = e1 @ e1.T / temperature - eye * LARGE_NUM
    bb = e2 @ e2.T / temperature - eye * LARGE_NUM
    ab = e1 @ e2.T / temperature
    ba = e2 @ e1.T / temperature
    la = jnp.concatenate([ab, aa], 1)
    lb = jnp.concatenate([ba, bb], 1)
    idx = jnp.arange(B)
    loss_a = jax.nn.logsumexp(la, -1) - la[idx, idx]
    loss_b = jax.nn.logsumexp(lb, -1) - lb[idx, idx]
    return jnp.mean(loss_a + loss_b)


if __name__ == "__main__":
    key = jax.random.PRNGKey(0)
    k1, k2, k3, k4 = jax.random.split(key, 4)

    # Config 1: B=8, D=128 — keys-resident path, no padding needed.
    B, D = 8, 128
    emb1 = jax.random.normal(k1, (B, D), dtype=jnp.float32)
    emb2 = jax.random.normal(k2, (B, D), dtype=jnp.float32)
    loss = ntxent_loss(emb1, emb2, temperature=1.0)
    jax.block_until_ready(loss)
    ref = ntxent_ref(emb1, emb2, temperature=1.0)
    assert jnp.allclose(loss, ref, rtol=1e-2, atol=1e-2), (loss, ref)

    # Config 2: B=12, D=256 — exercises row/key padding + resident path, t=0.5.
    B2, D2 = 12, 256
    emb1b = jax.random.normal(k3, (B2, D2), dtype=jnp.float32)
    emb2b = jax.random.normal(k4, (B2, D2), dtype=jnp.float32)
    loss2 = ntxent_loss(emb1b, emb2b, temperature=0.5)
    jax.block_until_ready(loss2)
    ref2 = ntxent_ref(emb1b, emb2b, temperature=0.5)
    assert jnp.allclose(loss2, ref2, rtol=1e-2, atol=1e-2), (loss2, ref2)

    # Config 3: force the streaming (flash-tiled) path: 4x4 tile grid, padding,
    # diagonal / off-diagonal / partner tiles all exercised.
    loss3 = ntxent_loss(emb1b, emb2b, temperature=0.5, block=8, resident=False)
    jax.block_until_ready(loss3)
    assert jnp.allclose(loss3, ref2, rtol=1e-2, atol=1e-2), (loss3, ref2)

    print("KERNEL_OK")
</pallas_src>

<mosaic_0001>
module attributes {stable_mosaic.version = 11 : i64} {
  func.func @kernel(%arg0: i32, %arg1: memref<1x1xf32, #tpu.memory_space<smem>>, %arg2: memref<16x128xbf16, #tpu.memory_space<vmem>>, %arg3: memref<8x1xf32, #tpu.memory_space<vmem>>) attributes {dimension_semantics = [#tpu.dimension_semantics<parallel>], iteration_bounds = array<i64: 2>, scalar_prefetch = 0 : i64, scratch_operands = 0 : i64, tpu.core_type = #tpu.core_type<tc>, window_params = [{transform_indices = @transform_0, window_bounds = array<i64: 1, 1>}, {pipeline_mode = #tpu.pipeline_mode<synchronous>, transform_indices = @transform_1, window_bounds = array<i64: 16, 128>}, {transform_indices = @transform_2, window_bounds = array<i64: 8, 1>}]} {
    %c0 = arith.constant 0 : index
    %c0_0 = arith.constant 0 : index
    %0 = memref.load %arg1[%c0, %c0_0] : memref<1x1xf32, #tpu.memory_space<smem>>
    %c8_i32 = arith.constant 8 : i32
    %1 = arith.muli %arg0, %c8_i32 : i32
    %2 = tpu.assume_multiple %1, 8 : i32
    %3 = arith.index_cast %2 : i32 to index
    %c0_1 = arith.constant 0 : index
    %4 = vector.load %arg2[%3, %c0_1] : memref<16x128xbf16, #tpu.memory_space<vmem>>, vector<8x128xbf16>
    %c0_2 = arith.constant 0 : index
    %c0_3 = arith.constant 0 : index
    %5 = vector.load %arg2[%c0_2, %c0_3] : memref<16x128xbf16, #tpu.memory_space<vmem>>, vector<16x128xbf16>
    %cst = arith.constant dense<0.000000e+00> : vector<8x16xf32>
    %6 = tpu.matmul %4, %5, %cst {dimension_numbers = #tpu.dot_dimension_numbers<[1], [1], [0], [0], [0, 0, 1, 0], [], []>} : vector<8x128xbf16>, vector<16x128xbf16>, vector<8x16xf32> -> vector<8x16xf32>
    %7 = vector.broadcast %0 : f32 to vector<8x16xf32>
    %8 = arith.mulf %6, %7 : vector<8x16xf32>
    %9 = tpu.iota {dimensions = array<i32: 0>} : vector<8x16xi32>
    %10 = vector.broadcast %2 : i32 to vector<8x16xi32>
    %11 = arith.addi %10, %9 : vector<8x16xi32>
    %12 = tpu.iota {dimensions = array<i32: 1>} : vector<8x16xi32>
    %c8_i32_4 = arith.constant 8 : i32
    %13 = vector.broadcast %c8_i32_4 : i32 to vector<8x16xi32>
    %14 = arith.cmpi slt, %12, %13 : vector<8x16xi32>
    %c8_i32_5 = arith.constant 8 : i32
    %15 = vector.broadcast %c8_i32_5 : i32 to vector<8x16xi32>
    %16 = arith.subi %12, %15 : vector<8x16xi32>
    %17 = arith.select %14, %12, %16 : vector<8x16xi1>, vector<8x16xi32>
    %18 = arith.cmpi eq, %11, %12 : vector<8x16xi32>
    %c8_i32_6 = arith.constant 8 : i32
    %19 = vector.broadcast %c8_i32_6 : i32 to vector<8x16xi32>
    %20 = arith.cmpi sge, %17, %19 : vector<8x16xi32>
    %21 = arith.ori %18, %20 : vector<8x16xi1>
    %cst_7 = arith.constant 1.000000e+09 : f32
    %22 = vector.broadcast %cst_7 : f32 to vector<8x16xf32>
    %23 = arith.subf %8, %22 : vector<8x16xf32>
    %24 = arith.select %21, %23, %8 : vector<8x16xi1>, vector<8x16xf32>
    %cst_8 = arith.constant dense<0xFF800000> : vector<8xf32>
    %25 = vector.multi_reduction <maximumf>, %24, %cst_8 [1] : vector<8x16xf32> to vector<8xf32>
    %26 = vector.shape_cast %25 : vector<8xf32> to vector<8x1xf32>
    %27 = vector.broadcast %26 : vector<8x1xf32> to vector<8x16xf32>
    %28 = arith.subf %24, %27 : vector<8x16xf32>
    %29 = math.exp %28 : vector<8x16xf32>
    %cst_9 = arith.constant dense<0.000000e+00> : vector<8xf32>
    %30 = vector.multi_reduction <add>, %29, %cst_9 [1] : vector<8x16xf32> to vector<8xf32>
    %31 = vector.shape_cast %30 : vector<8xf32> to vector<8x1xf32>
    %32 = math.log %31 : vector<8x1xf32>
    %33 = arith.addf %26, %32 : vector<8x1xf32>
    %c8_i32_10 = arith.constant 8 : i32
    %34 = vector.broadcast %c8_i32_10 : i32 to vector<8x16xi32>
    %35 = arith.cmpi slt, %11, %34 : vector<8x16xi32>
    %c8_i32_11 = arith.constant 8 : i32
    %36 = vector.broadcast %c8_i32_11 : i32 to vector<8x16xi32>
    %37 = arith.addi %11, %36 : vector<8x16xi32>
    %c8_i32_12 = arith.constant 8 : i32
    %38 = vector.broadcast %c8_i32_12 : i32 to vector<8x16xi32>
    %39 = arith.subi %11, %38 : vector<8x16xi32>
    %40 = arith.select %35, %37, %39 : vector<8x16xi1>, vector<8x16xi32>
    %41 = arith.cmpi eq, %12, %40 : vector<8x16xi32>
    %cst_13 = arith.constant 0.000000e+00 : f32
    %42 = vector.broadcast %cst_13 : f32 to vector<8x16xf32>
    %43 = arith.select %41, %8, %42 : vector<8x16xi1>, vector<8x16xf32>
    %cst_14 = arith.constant dense<0.000000e+00> : vector<8xf32>
    %44 = vector.multi_reduction <add>, %43, %cst_14 [1] : vector<8x16xf32> to vector<8xf32>
    %45 = vector.shape_cast %44 : vector<8xf32> to vector<8x1xf32>
    %46 = tpu.iota {dimensions = array<i32: 0>} : vector<8x1xi32>
    %47 = vector.broadcast %2 : i32 to vector<8x1xi32>
    %48 = arith.addi %47, %46 : vector<8x1xi32>
    %c8_i32_15 = arith.constant 8 : i32
    %49 = vector.broadcast %c8_i32_15 : i32 to vector<8x1xi32>
    %50 = arith.cmpi slt, %48, %49 : vector<8x1xi32>
    %c8_i32_16 = arith.constant 8 : i32
    %51 = vector.broadcast %c8_i32_16 : i32 to vector<8x1xi32>
    %52 = arith.subi %48, %51 : vector<8x1xi32>
    %53 = arith.select %50, %48, %52 : vector<8x1xi1>, vector<8x1xi32>
    %c8_i32_17 = arith.constant 8 : i32
    %54 = vector.broadcast %c8_i32_17 : i32 to vector<8x1xi32>
    %55 = arith.cmpi slt, %53, %54 : vector<8x1xi32>
    %56 = arith.subf %33, %45 : vector<8x1xf32>
    %cst_18 = arith.constant 0.000000e+00 : f32
    %57 = vector.broadcast %cst_18 : f32 to vector<8x1xf32>
    %58 = arith.select %55, %56, %57 : vector<8x1xi1>, vector<8x1xf32>
    %c0_19 = arith.constant 0 : index
    %c0_20 = arith.constant 0 : index
    %59 = vector.load %arg3[%c0_19, %c0_20] : memref<8x1xf32, #tpu.memory_space<vmem>>, vector<8x1xf32>
    tpu.vector_store %arg3[%c0_19, %c0_20], %58 {strides = array<i32>} : memref<8x1xf32, #tpu.memory_space<vmem>>, vector<8x1xf32>,
    return
  }
  func.func @transform_0(%arg0: i32) -> (i32, i32) {
    %c0_i32 = arith.constant 0 : i32
    %c0_i32_0 = arith.constant 0 : i32
    %c0_i32_1 = arith.constant 0 : i32
    return %c0_i32, %c0_i32_0 : i32, i32
  }
  func.func @transform_1(%arg0: i32) -> (i32, i32) {
    %c0_i32 = arith.constant 0 : i32
    %c0_i32_0 = arith.constant 0 : i32
    %c0_i32_1 = arith.constant 0 : i32
    return %c0_i32, %c0_i32_0 : i32, i32
  }
  func.func @transform_2(%arg0: i32) -> (i32, i32) {
    %c0_i32 = arith.constant 0 : i32
    %c0_i32_0 = arith.constant 0 : i32
    return %arg0, %c0_i32 : i32, i32
  }
}

</mosaic_0001>

<llo_original>
// kernel: tpu_custom_call.1
$region0: #{tpu_custom_call.1}
  #allocation0 [shape = 'u32[]', space=smem, size = 0x4, offset = 0x4, fixed_abs, tag = 'smem constant byte address 0x4 - core index']
  #allocation1 [shape = 'u32[72,128]{1,0:T(1,128)}', space=vmem, size = 0x9000, scoped, tag = 'internal scratch']
  #allocation2 [shape = 'f32[1,1]{1,0:T(1,128)S(6)}', space=smem, size = 0x200, scoped, tag = 'scoped memory for tpu_custom_call.1']
  %s0 = inlined_call_operand.<no memory space> [shape: f32[1,1], index: 0, kind: input, shape index: {}]
  %s1 = inlined_call_operand.hbm [shape: bf16[16,128], index: 1, kind: input, shape index: {}]
  %s2 = inlined_call_operand.vmem [shape: f32[16,1], index: 2, kind: output, shape index: {}]
  %s3 = sld [smem:[#allocation0]]
  $region45: #{tpu_custom_call.1} parent=0
    _
  %s5 = ssub.s32 1, %s3
  %s6 = scalar_select 0, %s5, %s3
  %7 = sst [smem:[#allocation2]] %s0
  $region1: #{tpu_custom_call.1} parent=0
    #allocation3 [shape = 'u8[4096]{0}', space=vmem, size = 0x1000, scoped, tag = 'input window, operand 1, single buffered']
    #allocation4 [shape = 's32[2]{0}', space=sflag, size = 0x8, scoped, tag = 'scoped memory for tpu_custom_call.1']
    %8 = vsyncpa [#allocation4], 0
    loop: start=0, step=1, limit=4
    $region2: #{tpu_custom_call.1} parent=1 // loop_pre_header
      _
    $region3: #{tpu_custom_call.1} parent=1 // loop_header
      %s10 = sphi 0, %s14
      %p11 = scmp.ge.s32.totalorder %s10, 4
      %s18 = sphi 0, %s18
      %s20 = sphi 0, %s18
      %s21 = sphi 0, %s20
      %s35 = sphi 0, %s21
      %s39 = sphi 0, %s39
      %s41 = sphi 0, %s39
      %s42 = sphi 0, %s41
      %s56 = sphi 0, %s42
      %s62 = sphi 0, %s64
      %s65 = sphi 0, %s62
      %s66 = sphi 0, %s65
      %s82 = sphi 0, %s66
    $region4: #{tpu_custom_call.1} parent=1 // loop_header_branch
      %13 = sbr.rel (%p11) target = $region8
    $region5: #{tpu_custom_call.1} parent=1 // loop_body
      %s15 = ssub.s32 %s10, 1
      %s16 = ssub.s32 %s10, 2
      %s17 = sadd.s32 %s10, 1
      %s19 = sadd.s32 %s18, 1
      %p22 = scmp.eq.s32.totalorder %s10, 1
      %p23 = scmp.ne.s32.totalorder %s18, %s20
      %p24 = scmp.eq.s32.totalorder %s10, 0
      %p25 = por %p23, %p24
      %p26 = scmp.ne.s32.totalorder %s18, %s20
      %p27 = scmp.eq.s32.totalorder %s15, 1
      %p28 = por %p26, %p27
      %p29 = scmp.ne.s32.totalorder %s20, %s21
      %p30 = scmp.eq.s32.totalorder %s15, 0
      %p31 = por %p29, %p30
      %p32 = scmp.ne.s32.totalorder %s20, %s21
      %p33 = scmp.eq.s32.totalorder %s16, 1
      %p34 = por %p32, %p33
      %p36 = scmp.ne.s32.totalorder %s21, %s35
      %p37 = scmp.eq.s32.totalorder %s16, 0
      %p38 = por %p36, %p37
      %s40 = sadd.s32 %s39, 1
      %p43 = scmp.eq.s32.totalorder %s10, 1
      %p44 = scmp.ne.s32.totalorder %s39, %s41
      %p45 = scmp.eq.s32.totalorder %s10, 0
      %p46 = por %p44, %p45
      %p47 = scmp.ne.s32.totalorder %s39, %s41
      %p48 = scmp.eq.s32.totalorder %s15, 1
      %p49 = por %p47, %p48
      %p50 = scmp.ne.s32.totalorder %s41, %s42
      %p51 = scmp.eq.s32.totalorder %s15, 0
      %p52 = por %p50, %p51
      %p53 = scmp.ne.s32.totalorder %s41, %s42
      %p54 = scmp.eq.s32.totalorder %s16, 1
      %p55 = por %p53, %p54
      %p57 = scmp.ne.s32.totalorder %s42, %s56
      %p58 = scmp.eq.s32.totalorder %s16, 0
      %p59 = por %p57, %p58
      %s60 = ssub.s32 %s10, %s17
      %p61 = scmp.eq.s32.totalorder %s60, 0
      %s63 = sadd.s32 %s62, 1
      %s64 = scalar_select %p61, %s62, %s63
      %p67 = pneg %p61
      %p68 = scmp.eq.s32.totalorder %s10, 1
      %p69 = por %p67, %p68
      %p70 = scmp.ne.s32.totalorder %s62, %s65
      %p71 = scmp.eq.s32.totalorder %s10, 0
      %p72 = por %p70, %p71
      %p73 = scmp.ne.s32.totalorder %s62, %s65
      %p74 = scmp.eq.s32.totalorder %s15, 1
      %p75 = por %p73, %p74
      %p76 = scmp.ne.s32.totalorder %s65, %s66
      %p77 = scmp.eq.s32.totalorder %s15, 0
      %p78 = por %p76, %p77
      %p79 = scmp.ne.s32.totalorder %s65, %s66
      %p80 = scmp.eq.s32.totalorder %s16, 1
      %p81 = por %p79, %p80
      %p83 = scmp.ne.s32.totalorder %s66, %s82
      %p84 = scmp.eq.s32.totalorder %s16, 0
      %p85 = por %p83, %p84
      %p86 = scmp.le.s32.totalorder 1, %s10
      %p87 = scmp.lt.s32.totalorder %s10, 3
      %p88 = pnand %p86, %p87
      %p89 = pneg %p88
      // Predicated region
      $region9: #{tpu_custom_call.1} parent=5 // pred_check
        _
      $region10: #{tpu_custom_call.1} parent=5 // pred_check_branch
        %91 = sbr.rel (%p88) target = $region12
      $region11: #{tpu_custom_call.1} parent=5 // pred_region
        %s92 = ssub.s32 %s10, 1
        // Predicated region
        $region13: #{tpu_custom_call.1} parent=11 // pred_check
          %p93 = pneg %p31
        $region14: #{tpu_custom_call.1} parent=11 // pred_check_branch
          %95 = sbr.rel (%p93) target = $region16
        $region15: #{tpu_custom_call.1} parent=11 // pred_region
          _
        $region16: #{tpu_custom_call.1} parent=11 // pred_fallthru
          _
        // Predicated region
        $region17: #{tpu_custom_call.1} parent=11 // pred_check
          %p96 = pneg %p52
        $region18: #{tpu_custom_call.1} parent=11 // pred_check_branch
          %98 = sbr.rel (%p96) target = $region20
        $region19: #{tpu_custom_call.1} parent=11 // pred_region
          %100 = vsyncadd [#allocation4], 0
          %s101 = sshll.u32 %s1, 4
          %s102 = int_to_ptr.hbm [resolvable:$true] %s101
          %s103 = sshll.u32 [#allocation3], 4
          %s104 = int_to_ptr.vmem [resolvable:$true] %s103
          %109 = dma.hbm_to_vmem [thread:$0]  %s102, 128, %s104, [#allocation4], 64, 64, 4
        $region20: #{tpu_custom_call.1} parent=11 // pred_fallthru
          _
      $region12: #{tpu_custom_call.1} parent=5 // pred_fallthru
        _
      %p110 = scmp.lt.s32.totalorder %s10, 2
      // Predicated region
      $region21: #{tpu_custom_call.1} parent=5 // pred_check
        %p111 = pneg %p110
      $region22: #{tpu_custom_call.1} parent=5 // pred_check_branch
        %113 = sbr.rel (%p111) target = $region24
      $region23: #{tpu_custom_call.1} parent=5 // pred_region
        _
      $region24: #{tpu_custom_call.1} parent=5 // pred_fallthru
        _
      %p114 = scmp.le.s32.totalorder 1, %s10
      %p115 = scmp.lt.s32.totalorder %s10, 3
      %p116 = pnand %p114, %p115
      %p117 = pneg %p116
      // Predicated region
      $region25: #{tpu_custom_call.1} parent=5 // pred_check
        _
      $region26: #{tpu_custom_call.1} parent=5 // pred_check_branch
        %119 = sbr.rel (%p116) target = $region28
      $region27: #{tpu_custom_call.1} parent=5 // pred_region
        %s120 = ssub.s32 %s10, 1
        // Predicated region
        $region29: #{tpu_custom_call.1} parent=27 // pred_check
          %p121 = pneg %p52
        $region30: #{tpu_custom_call.1} parent=27 // pred_check_branch
          %123 = sbr.rel (%p121) target = $region32
        $region31: #{tpu_custom_call.1} parent=27 // pred_region
          %125 = dma.done [#allocation4], 128
        $region32: #{tpu_custom_call.1} parent=27 // pred_fallthru
          _
        %p126 = pneg %p31
        %p127 = pneg %p28
        %p128 = pneg %p52
        %p129 = pneg %p49
        %p130 = pneg %p78
        %p131 = pneg %p75
        %p132 = scmp.lt.s32.totalorder %s15, 1
        %s133 = scalar_select %p132, %s15, 1
        %s134 = smul.addr %s133, 8
        %s135 = scalar_lea.vmem %s2, %s134
        %p136 = scmp.lt.s32.totalorder %s15, 1
        %s137 = scalar_select %p136, %s15, 1
        %s138 = smul.addr %s137, 8
        %s139 = scalar_lea.vmem %s2, %s138
        %s141 = sld [smem:[#allocation2]]
        %s142 = smul.u32 %s15, 8
        %s143 = sshra.s32 %s142, 3
        %s144 = sand.u32 %s142, 7
        %s145 = smul.addr %s143, 4
        %s146 = scalar_lea.vmem [#allocation3], %s145
        %v147 = vld [vmem:[%s146] sm:$0xf]
        %v148 = vld [vmem:[#allocation3] sm:$0xf]
        %v149 = vld [vmem:[#allocation3 + $0x4] sm:$0xf]
        %v152 = vunpack.c.l.b16 %v148
        %v153 = vunpack.c.l.b16 %v149
        %v154 = vpack.c.b16 %v153, %v152
        %156 = vmatpush.bf16.xpose.msra.mxu0 0
        %157 = vmatpush.bf16.xpose.msra.mxu0 0
        %158 = vmatpush.bf16.xpose.msra.mxu0 0
        %159 = vmatpush.bf16.xpose.msra.mxu0 0
        %160 = vmatpush.bf16.xpose.msra.mxu0 0
        %161 = vmatpush.bf16.xpose.msra.mxu0 0
        %162 = vmatpush.bf16.xpose.msra.mxu0 0
        %163 = vmatpush.bf16.xpose.msra.mxu0 %v154
        %164 = vmatmul.bf16.gmra.mxu0 %v147
        %v165 = vpop.f32.mrf.mxu0
        %v166 = vadd.f32 0.0, %v165
        %v167 = vpop.f32.mrf.mxu0
        %168 = vdwg.mxu0
        %v169 = vstv %s141
        %v170 = vmul.f32 %v166, %v169
        %v171 = vlaneseq
        %v172 = vshrl.u32 %v171, 7
        %v173 = vstv %s142
        %v174 = vadd.s32 %v173, %v172
        %v175 = vlaneseq
        %v176 = vand.u32 %v175, 127
        %vm177 = vcmp.lt.s32.totalorder %v176, 8
        %v178 = vsub.s32 %v176, 8
        %v179 = vsel %vm177, %v176, %v178
        %vm180 = vcmp.eq.s32.totalorder %v174, %v176
        %vm181 = vcmp.ge.s32.totalorder %v179, 8
        %vm182 = vmor %vm180, %vm181
        %v183 = vsub.f32 %v170, 1e+09
        %v184 = vsel %vm182, %v183, %v170
        %vm185 = vcmask 130048
        %v186 = vsel %vm185, %v184, -inf
        %187 = vmax.xlane.f32.xlu0 %v186
        %v188 = vpop.xlane.xlu0 %187
        %v189 = vsub.f32 %v184, %v188
        %v190 = vmul.f32 %v189, 1.442695
        %v191 = vpow.pop %v190
        %v192 = vsel %vm185, %v191, 0.0
        %193 = vadd.xlane.f32.xlu0 %v192
        %v194 = vpop.xlane.xlu0 %193
        %v195 = vlog2.pop %v194
        %v196 = vmul.f32 %v195, 0.6931472
        %v197 = vadd.f32 %v188, %v196
        %vm198 = vcmp.lt.s32.totalorder %v174, 8
        %v199 = vadd.s32 %v174, 8
        %v200 = vsub.s32 %v174, 8
        %v201 = vsel %vm198, %v199, %v200
        %vm202 = vcmp.eq.s32.totalorder %v176, %v201
        %v203 = vsel %vm202, %v170, 0.0
        %v204 = vsel %vm185, %v203, 0.0
        %205 = vadd.xlane.f32.xlu0 %v204
        %v206 = vpop.xlane.xlu0 %205
        %v207 = vsel %vm198, %v174, %v200
        %vm208 = vcmp.lt.s32.totalorder %v207, 8
        %v209 = vsub.f32 %v197, %v206
        %v210 = vsel %vm208, %v209, 0.0
        %vm211 = vcmask 7168
        %212 = vst.msk [vmem:[%s139] sm:$0xff] %vm211, %v210
        %p213 = scmp.lt.s32.totalorder %s15, 1
        %s214 = scalar_select %p213, %s15, 1
        %s215 = smul.addr %s214, 8
        %s216 = scalar_lea.vmem %s2, %s215
        // Predicated region
        $region33: #{tpu_custom_call.1} parent=27 // pred_check
          %p217 = pneg %p75
        $region34: #{tpu_custom_call.1} parent=27 // pred_check_branch
          %219 = sbr.rel (%p217) target = $region36
        $region35: #{tpu_custom_call.1} parent=27 // pred_region
          _
        $region36: #{tpu_custom_call.1} parent=27 // pred_fallthru
          _
      $region28: #{tpu_custom_call.1} parent=5 // pred_fallthru
        _
      %p220 = scmp.le.s32.totalorder 2, %s10
      // Predicated region
      $region37: #{tpu_custom_call.1} parent=5 // pred_check
        %p221 = pneg %p220
      $region38: #{tpu_custom_call.1} parent=5 // pred_check_branch
        %223 = sbr.rel (%p221) target = $region40
      $region39: #{tpu_custom_call.1} parent=5 // pred_region
        %s224 = ssub.s32 %s10, 2
        // Predicated region
        $region41: #{tpu_custom_call.1} parent=39 // pred_check
          %p225 = pneg %p81
        $region42: #{tpu_custom_call.1} parent=39 // pred_check_branch
          %227 = sbr.rel (%p225) target = $region44
        $region43: #{tpu_custom_call.1} parent=39 // pred_region
          %p228 = scmp.lt.s32.totalorder %s16, 1
          %s229 = scalar_select %p228, %s16, 1
          %s230 = smul.addr %s229, 8
          %s231 = scalar_lea.vmem %s2, %s230
        $region44: #{tpu_custom_call.1} parent=39 // pred_fallthru
          _
      $region40: #{tpu_custom_call.1} parent=5 // pred_fallthru
        _
    $region6: #{tpu_custom_call.1} parent=1 // loop_footer
      %s14 = sadd.s32 1, %s10
    $region7: #{tpu_custom_call.1} parent=1 // loop_footer_branch
      %9 = sbr.rel target = $region3
    $region8: #{tpu_custom_call.1} parent=1 // loop_exit
      _
    %232 = vsyncpa [#allocation4], 1
    %s233 = scalar_lea.sflag [#allocation4], 1
    %234 = vsyncpa %s233, 1

</llo_original>
